<compile_context>
chip_gen: v6e
topology: v6e:2x2x1
jax: 0.10.0
libtpu: 0.0.40
codegen_flags: <defaults>
</compile_context>

<pallas_src>
import functools

import jax
import jax.numpy as jnp
import numpy as np
from jax.experimental import pallas as pl
from jax.experimental.pallas import tpu as pltpu


def _round_up(x, m):
    return ((x + m - 1) // m) * m


def _select_sizes(Lv, Lt, ratio):
    k_v = max(int((Lv - 1) * ratio), 1)
    k_t = max(int((Lt - 2) * ratio), 1)
    K = _round_up(max(k_v, k_t), 8)        # pad to sublane multiple -> layout-trivial reshapes
    return k_v, k_t, K


# -----------------------------------------------------------------------------
# Kernel 1: fused TSE (token-selection embedding) for BOTH modalities.
#   Streams (tb, tk, D) bf16 chunks of already-gathered top-k tokens.
#   per-token: l2norm (f32 sum-of-squares, scale folded into the matmul output)
#   -> bf16 linear1 -> relu -> bf16 linear2 (f32 acc), then a running max over the
#   K chunks in a VMEM accumulator (dropped/padded slots duplicate the top-1 token,
#   so the max needs NO mask and NO -inf sentinel).
# -----------------------------------------------------------------------------
def _tse_kernel(tb, tk, feats_ref, w1_ref, b1_ref, w2_ref, b2_ref, out_ref, acc_ref):
    kc = pl.program_id(2)

    x = feats_ref[0]                                   # [tb, tk, D] bf16
    d = x.shape[-1]
    x2 = x.reshape(tb * tk, d)                         # tk % 8 == 0 -> layout-trivial

    # l2-norm: sum of squares in f32 (input is bf16); fold the per-token scale into
    # the post-matmul rows:  (s * x) @ W1 == s * (x @ W1)  -> no normalized copy of x.
    xf = x2.astype(jnp.float32)
    inv_norm = jax.lax.rsqrt(jnp.sum(xf * xf, axis=-1, keepdims=True) + 1e-12)

    h = jnp.dot(x2, w1_ref[0], preferred_element_type=jnp.float32) * inv_norm + b1_ref[0]
    h = jnp.maximum(h, 0.0)
    y = jnp.dot(h.astype(jnp.bfloat16), w2_ref[0],
                preferred_element_type=jnp.float32) + b2_ref[0]     # [tb*tk, E] f32

    e = y.shape[-1]
    chunk_max = jnp.max(y.reshape(tb, tk, e), axis=1)  # [tb, E]

    @pl.when(kc == 0)
    def _():
        acc_ref[...] = chunk_max

    @pl.when(kc != 0)
    def _():
        acc_ref[...] = jnp.maximum(acc_ref[...], chunk_max)

    @pl.when(kc == pl.num_programs(2) - 1)
    def _():
        out_ref[0] = acc_ref[...]


def _tse_vmem_bytes(tb, tk, D, H, E):
    n = tb * tk
    stream = 2 * n * D * 2                               # double-buffered bf16 token tile
    weights = 2 * ((D * H + H * E) * 2 + (H + E) * 4)    # bf16 W + f32 b, double-buffered
    out = 2 * tb * E * 4
    acc = tb * E * 4
    inter = n * (4 * D + 6 * H + 4 * E)                  # xf, h(f32+bf16), y upper bound
    return stream + weights + out + acc + inter


def _pick_k_tile(K, max_tk=64):
    tk = 8
    for cand in range(8, min(K, max_tk) + 1, 8):
        if K % cand == 0:
            tk = cand
    return tk


def _pick_batch_tile(B, tk, D, H, E, budget):
    cap = min(128, _round_up(B, 8))
    tb = 8
    for cand in range(8, cap + 1, 8):
        if _tse_vmem_bytes(cand, tk, D, H, E) <= budget:
            tb = cand
    return tb


def tse_embed_fused(feats, w1, b1, w2, b2, *, vmem_budget_bytes=40 * 1024 * 1024):
    """feats: [2, B, K, D] bf16 (gathered top-k tokens); w1: [2, D, H] bf16;
    b1: [2, 1, H] f32; w2: [2, H, E] bf16; b2: [2, 1, E] f32.  Returns [2, B, E] f32."""
    M, B, K, D = feats.shape
    H = w1.shape[-1]
    E = w2.shape[-1]

    tk = _pick_k_tile(K)
    tb = _pick_batch_tile(B, tk, D, H, E, vmem_budget_bytes)
    if tb >= B and B > 8:                 # v7x megacore: prefer >= 2 batch tiles
        tb = max(8, _round_up((B + 1) // 2, 8))
    B_pad = _round_up(B, tb)
    if B_pad != B:                        # pad batch instead of the tb=B fallback
        feats = jnp.pad(feats, ((0, 0), (0, B_pad - B), (0, 0), (0, 0)))
    nb, nk = B_pad // tb, K // tk

    est = _tse_vmem_bytes(tb, tk, D, H, E)
    vmem_limit = int(min(max(2 * est, 32 * 1024 * 1024), 48 * 1024 * 1024))

    cost = pl.CostEstimate(
        flops=2 * M * B_pad * K * (D * H + H * E),
        transcendentals=M * B_pad * K,
        bytes_accessed=int(feats.size * feats.dtype.itemsize
                           + sum(int(a.size) * a.dtype.itemsize for a in (w1, b1, w2, b2))
                           + M * B_pad * E * 4))

    kernel = functools.partial(_tse_kernel, tb, tk)
    out = pl.pallas_call(
        kernel,
        out_shape=jax.ShapeDtypeStruct((M, B_pad, E), jnp.float32),
        grid=(nb, M, nk),                 # batch tiles lead (megacore), K-chunks innermost
        in_specs=[
            pl.BlockSpec((1, tb, tk, D), lambda i, m, kc: (m, i, kc, 0)),  # streamed tokens
            pl.BlockSpec((1, D, H), lambda i, m, kc: (m, 0, 0)),           # bf16 weights,
            pl.BlockSpec((1, 1, H), lambda i, m, kc: (m, 0, 0)),           # resident per
            pl.BlockSpec((1, H, E), lambda i, m, kc: (m, 0, 0)),           # modality
            pl.BlockSpec((1, 1, E), lambda i, m, kc: (m, 0, 0)),
        ],
        out_specs=pl.BlockSpec((1, tb, E), lambda i, m, kc: (m, i, 0)),
        scratch_shapes=[pltpu.VMEM((tb, E), jnp.float32)],                 # running max
        compiler_params=pltpu.CompilerParams(
            dimension_semantics=("parallel", "parallel", "arbitrary"),
            vmem_limit_bytes=vmem_limit),
        cost_estimate=cost,
    )(feats, w1, b1, w2, b2)
    return out[:, :B] if B_pad != B else out


# -----------------------------------------------------------------------------
# Kernel 2: objectives.compute_rbs with TAL loss (loss_type='TAL').
#   normalize (rsqrt+eps), f32 B x B NT matmul (do NOT bf16: rounding x 1/tau would
#   corrupt exp), labels built in-kernel from int32 pid vectors, exp computed once
#   and reused for both directions (column-wise reductions instead of transposes).
# -----------------------------------------------------------------------------
def _rbs_kernel(tau, margin,
                if_ref, tf_ref, itse_ref, ttse_ref,
                pidc_ref, pidr_ref, lhc_ref, lhr_ref,
                out_bge_ref, out_tse_ref):
    labels = (pidc_ref[...] == pidr_ref[...]).astype(jnp.float32)    # [B, B] exact int cmp
    lhc = lhc_ref[...]                       # [B, 1]
    lhr = lhr_ref[...]                       # [1, B]
    inv_tau = jnp.float32(1.0 / tau)
    tau_f = jnp.float32(tau)
    margin_f = jnp.float32(margin)

    def tal(img, txt):
        img_n = img * jax.lax.rsqrt(jnp.sum(img * img, -1, keepdims=True) + 1e-12)
        txt_n = txt * jax.lax.rsqrt(jnp.sum(txt * txt, -1, keepdims=True) + 1e-12)
        # scores[i, j] = <txt_i, img_j>  == txt_n @ img_n.T without an explicit transpose
        scores = jax.lax.dot_general(txt_n, img_n,
                                     dimension_numbers=(((1,), (1,)), ((), ())),
                                     preferred_element_type=jnp.float32)     # [B, B] f32
        # |scores| <= 1 after normalization -> |scores/tau| <= 50 << 88 (f32 exp range).
        # Max-subtraction is intentionally omitted: at tau=0.02 it would push
        # positive-pair terms toward the f32 flush-to-zero range (exp(-2/tau)).
        e = jnp.exp(scores * inv_tau)        # single EUP pass; reused for both directions
        pos = e * labels

        # text -> image direction (rows of scores)
        alpha_r = pos / jnp.sum(pos, axis=1, keepdims=True)
        lr = jnp.maximum(-jnp.sum(alpha_r * scores, axis=1, keepdims=True)
                         + tau_f * jnp.log(jnp.sum(e, axis=1, keepdims=True))
                         + margin_f, 0.0)                                    # [B, 1]
        # image -> text direction == branch(scores.T), done column-wise (no transpose)
        alpha_c = pos / jnp.sum(pos, axis=0, keepdims=True)
        lc = jnp.maximum(-jnp.sum(alpha_c * scores, axis=0, keepdims=True)
                         + tau_f * jnp.log(jnp.sum(e, axis=0, keepdims=True))
                         + margin_f, 0.0)                                    # [1, B]
        return (jnp.sum(lr * lhc) + jnp.sum(lc * lhr)) * 0.5

    out_bge_ref[...] = jnp.full((1, 1), tal(if_ref[...], tf_ref[...]), jnp.float32)
    out_tse_ref[...] = jnp.full((1, 1), tal(itse_ref[...], ttse_ref[...]), jnp.float32)


def compute_rbs_pallas(i_feats, t_feats, i_tse, t_tse, pids, label_hat, tau, margin):
    B, D = i_feats.shape
    E = i_tse.shape[1]
    pid_col = pids.astype(jnp.int32).reshape(B, 1)
    pid_row = pids.astype(jnp.int32).reshape(1, B)
    lhat_col = label_hat.astype(jnp.float32).reshape(B, 1)
    lhat_row = label_hat.astype(jnp.float32).reshape(1, B)
    kernel = functools.partial(_rbs_kernel, float(tau), float(margin))
    # TODO(synk): the two scalar losses stay as (1,1) VMEM outputs — storing
    # vector-reduced scalars directly into SMEM outputs is a lowering risk and the
    # extra HBM traffic is 8 bytes for this single-grid-step kernel.
    out_bge, out_tse = pl.pallas_call(
        kernel,
        out_shape=(jax.ShapeDtypeStruct((1, 1), jnp.float32),
                   jax.ShapeDtypeStruct((1, 1), jnp.float32)),
        grid=(1,),
        in_specs=[
            pl.BlockSpec((B, D), lambda i: (0, 0)),
            pl.BlockSpec((B, D), lambda i: (0, 0)),
            pl.BlockSpec((B, E), lambda i: (0, 0)),
            pl.BlockSpec((B, E), lambda i: (0, 0)),
            pl.BlockSpec((B, 1), lambda i: (0, 0)),
            pl.BlockSpec((1, B), lambda i: (0, 0)),
            pl.BlockSpec((B, 1), lambda i: (0, 0)),
            pl.BlockSpec((1, B), lambda i: (0, 0)),
        ],
        out_specs=(pl.BlockSpec((1, 1), lambda i: (0, 0)),
                   pl.BlockSpec((1, 1), lambda i: (0, 0))),
        compiler_params=pltpu.CompilerParams(dimension_semantics=("arbitrary",)),
    )(i_feats, t_feats, i_tse, t_tse, pid_col, pid_row, lhat_col, lhat_row)
    return out_bge[0, 0], out_tse[0, 0]


# -----------------------------------------------------------------------------
# JAX glue: attention-based top-k token selection -> index arrays (padded to K).
# Dropped / padded slots are filled with the top-1 selected index (always kept),
# so max-pooling over all K slots equals max-pooling over the kept set: no mask.
# -----------------------------------------------------------------------------
def _visual_topk_indices(atten_v, k, K_pad):
    B, L, _ = atten_v.shape
    row = atten_v[:, 0, :].at[:, 0].set(-1.0)          # CLS attention row, kill CLS column
    _, idx = jax.lax.top_k(row, k)                     # [B, k]
    if K_pad > k:
        idx = jnp.concatenate(
            [idx, jnp.broadcast_to(idx[:, :1], (B, K_pad - k))], axis=1)
    return idx                                         # [B, K_pad]


def _textual_topk_indices(atten_t, text, k, K_pad):
    B, L, _ = atten_t.shape
    eot = jnp.argmax(text, axis=-1)                    # EOT = max token id
    pad_mask = (text != 0).astype(jnp.float32)         # [B, L]
    row = atten_t[jnp.arange(B), eot, :]               # EOT attention row [B, L]
    row = row.at[jnp.arange(B), eot].set(-1.0)         # kill EOT column
    row = row.at[:, 0].set(-1.0)                       # kill BOS column
    row = row * pad_mask
    _, idx = jax.lax.top_k(row, k)                     # descending order
    lengths = jnp.sum(pad_mask, axis=1) - 2.0          # as in TexualEmbeddingLayer
    keep_n = jnp.clip(lengths, 1.0, float(k))          # pool first min(k, length) tokens
    keep = jnp.arange(k)[None, :] < keep_n[:, None]
    idx = jnp.where(keep, idx, idx[:, :1])             # duplicate top-1 into dropped slots
    if K_pad > k:
        idx = jnp.concatenate(
            [idx, jnp.broadcast_to(idx[:, :1], (B, K_pad - k))], axis=1)
    return idx                                         # [B, K_pad]


def _mask_from_indices(idx, L):
    B = idx.shape[0]
    m = jnp.zeros((B, L), jnp.float32).at[jnp.arange(B)[:, None], idx].set(1.0)
    return m[..., None]                                # [B, L, 1] (reference only)


def _gather_tokens(feats, idx):
    B, L, D = feats.shape
    K = idx.shape[1]
    gidx = jnp.broadcast_to(idx[:, :, None], (B, K, D))
    return jnp.take_along_axis(feats, gidx, axis=1)    # [B, K, D]


# -----------------------------------------------------------------------------
# RDE module (JAX): parameters + forward
# -----------------------------------------------------------------------------
def init_rde_params(key, input_dim, tse_embed_dim):
    # NOTE: hidden width H = tse_embed_dim // 2 is the MXU contraction depth of the
    # second matmul; for v6e/v7x (256-wide MXU) prefer configs with H >= 256.
    h = tse_embed_dim // 2
    k1, k2, k3, k4 = jax.random.split(key, 4)
    s = 0.02
    return {
        # VisualEmbeddingLayer (the unused `fc` branch is dead code and skipped)
        "vis_w1": jax.random.normal(k1, (input_dim, h), jnp.float32) * s,
        "vis_b1": jnp.zeros((1, h), jnp.float32),
        "vis_w2": jax.random.normal(k2, (h, tse_embed_dim), jnp.float32) * s,
        "vis_b2": jnp.zeros((1, tse_embed_dim), jnp.float32),
        # TexualEmbeddingLayer
        "txt_w1": jax.random.normal(k3, (input_dim, h), jnp.float32) * s,
        "txt_b1": jnp.zeros((1, h), jnp.float32),
        "txt_w2": jax.random.normal(k4, (h, tse_embed_dim), jnp.float32) * s,
        "txt_b2": jnp.zeros((1, tse_embed_dim), jnp.float32),
    }


def rde_forward(params, batch, *, ratio, tau, margin, temperature):
    video_feats = batch["video_feats"]     # [B, Lv, D] base_model video tokens (CLS at 0)
    atten_v = batch["atten_v"]             # [B, Lv, Lv]
    text_feats = batch["text_feats"]       # [B, Lt, D] base_model text tokens
    atten_t = batch["atten_t"]             # [B, Lt, Lt]
    caption_ids = batch["caption_ids"]     # [B, Lt] int32
    pids = batch["pids"]                   # [B]
    label_hat = batch["label_hat"]         # [B]

    B, Lv, D = video_feats.shape
    Lt = text_feats.shape[1]

    # TODO(synk): pretrained CLIP base_model forward not re-implemented; token
    # features/attentions are taken as inputs; CLS / EOT tokens give the global
    # features (as `i_feats = video_feats.float()` / text argmax gather in original).
    i_feats = video_feats[:, 0, :].astype(jnp.float32)
    eot_idx = jnp.argmax(caption_ids, axis=-1)
    t_feats = text_feats[jnp.arange(B), eot_idx].astype(jnp.float32)

    k_v, k_t, K = _select_sizes(Lv, Lt, ratio)
    vis_idx = _visual_topk_indices(atten_v, k_v, K)
    txt_idx = _textual_topk_indices(atten_t, caption_ids, k_t, K)

    # gather ONLY the selected tokens (k << L); bf16 cast fused at the gather so the
    # slab is written once in bf16 (half the HBM traffic around the kernel).
    # TODO(synk): fully in-kernel gather (indices via PrefetchScalarGridSpec + per-chunk
    # DMA from pl.ANY token tensors) left out; the bf16 slab is the cheap 80% of it.
    vis_tok = _gather_tokens(video_feats, vis_idx).astype(jnp.bfloat16)   # [B, K, D]
    txt_tok = _gather_tokens(text_feats, txt_idx).astype(jnp.bfloat16)    # [B, K, D]
    feats = jnp.stack([vis_tok, txt_tok], axis=0)                         # [2, B, K, D]

    w1 = jnp.stack([params["vis_w1"], params["txt_w1"]]).astype(jnp.bfloat16)
    b1 = jnp.stack([params["vis_b1"], params["txt_b1"]])                  # f32
    w2 = jnp.stack([params["vis_w2"], params["txt_w2"]]).astype(jnp.bfloat16)
    b2 = jnp.stack([params["vis_b2"], params["txt_b2"]])                  # f32

    tse = tse_embed_fused(feats, w1, b1, w2, b2)                          # [2, B, E] f32
    i_tse_f, t_tse_f = tse[0], tse[1]

    # TODO(synk): the RBS loss stays a separate (tiny) pallas_call; fusing it into the
    # TSE call would require the full-batch TSE output as a carried VMEM accumulator.
    bge_loss, tse_loss = compute_rbs_pallas(
        i_feats, t_feats, i_tse_f, t_tse_f, pids, label_hat, tau, margin)

    return {"temperature": jnp.float32(temperature),   # 1 / logit_scale
            "bge_loss": bge_loss,
            "tse_loss": tse_loss}


# -----------------------------------------------------------------------------
# pure-JAX reference (correctness check only).  The TSE reference keeps the
# ORIGINAL full-token masked formulation (mask built from the same indices) and
# mirrors the kernel's precision policy (bf16 tokens/weights, f32 norm + accumulate,
# normalization scale applied after the first matmul).
# -----------------------------------------------------------------------------
def _ref_tse(feats, mask, w1, b1, w2, b2):
    B, L, D = feats.shape
    x = feats.astype(jnp.bfloat16).reshape(B * L, D)
    xf = x.astype(jnp.float32)
    inv = jax.lax.rsqrt(jnp.sum(xf * xf, -1, keepdims=True) + 1e-12)
    h = jnp.maximum(
        jnp.dot(x, w1.astype(jnp.bfloat16), preferred_element_type=jnp.float32) * inv + b1,
        0.0)
    y = (jnp.dot(h.astype(jnp.bfloat16), w2.astype(jnp.bfloat16),
                 preferred_element_type=jnp.float32) + b2).reshape(B, L, -1)
    return jnp.max(jnp.where(mask > 0, y, -1e30), axis=1)


def _ref_tal(img, txt, pids, label_hat, tau, margin):
    img_n = img / jnp.linalg.norm(img, axis=-1, keepdims=True)
    txt_n = txt / jnp.linalg.norm(txt, axis=-1, keepdims=True)
    scores = txt_n @ img_n.T
    pid = pids.reshape(-1, 1).astype(jnp.float32)
    labels = (pid - pid.T == 0).astype(jnp.float32)

    def branch(s):
        e = jnp.exp(s / tau)
        alpha = e * labels / jnp.sum(e * labels, 1, keepdims=True)
        return jnp.maximum(-jnp.sum(alpha * s, 1) + tau * jnp.log(jnp.sum(e, 1)) + margin, 0.0)

    return jnp.sum((branch(scores) + branch(scores.T)) * label_hat) / 2.0


if __name__ == "__main__":
    # E lane-dense (multiple of 128), H = E//2 = 128 (lane-dense hidden)
    B, Lv, Lt, D, E = 8, 16, 16, 128, 256
    ratio, tau, margin, temperature = 0.3, 0.02, 0.1, 0.02

    key = jax.random.PRNGKey(0)
    k1, k2, k3, k4, kp = jax.random.split(key, 5)
    video_feats = jax.random.normal(k1, (B, Lv, D), jnp.float32)
    atten_v = jax.nn.softmax(jax.random.normal(k2, (B, Lv, Lv), jnp.float32), axis=-1)
    text_feats = jax.random.normal(k3, (B, Lt, D), jnp.float32)
    atten_t = jax.nn.softmax(jax.random.normal(k4, (B, Lt, Lt), jnp.float32), axis=-1)

    # deterministic caption ids: BOS=2, body tokens, EOT=499 (max id), pads=0
    lengths = [16, 12, 10, 14, 5, 16, 9, 11]   # includes a short caption (exercises keep_n)
    cap = np.zeros((B, Lt), np.int32)
    for b in range(B):
        l = lengths[b]
        cap[b, 0] = 2
        cap[b, 1:l - 1] = 5 + (np.arange(l - 2) * 7 + b) % 100
        cap[b, l - 1] = 499
    caption_ids = jnp.asarray(cap)

    pids = jnp.asarray(np.array([0, 1, 1, 2, 3, 3, 4, 0], np.int32))
    label_hat = jnp.asarray(np.array([1, 1, 0, 1, 1, 0, 1, 1], np.float32))

    params = init_rde_params(kp, D, E)
    batch = {"video_feats": video_feats, "atten_v": atten_v,
             "text_feats": text_feats, "atten_t": atten_t,
             "caption_ids": caption_ids, "pids": pids, "label_hat": label_hat}

    ret = rde_forward(params, batch, ratio=ratio, tau=tau, margin=margin,
                      temperature=temperature)
    jax.block_until_ready(ret)

    # reference check (same token selection, masked full-L formulation)
    k_v, k_t, K = _select_sizes(Lv, Lt, ratio)
    vis_idx = _visual_topk_indices(atten_v, k_v, K)
    txt_idx = _textual_topk_indices(atten_t, caption_ids, k_t, K)
    vm = _mask_from_indices(vis_idx, Lv)
    tm = _mask_from_indices(txt_idx, Lt)
    i_tse_ref = _ref_tse(video_feats, vm, params["vis_w1"], params["vis_b1"],
                         params["vis_w2"], params["vis_b2"])
    t_tse_ref = _ref_tse(text_feats, tm, params["txt_w1"], params["txt_b1"],
                         params["txt_w2"], params["txt_b2"])
    i_feats = video_feats[:, 0, :]
    t_feats = text_feats[jnp.arange(B), jnp.argmax(caption_ids, -1)]
    ref_bge = _ref_tal(i_feats, t_feats, pids, label_hat, tau, margin)
    ref_tse = _ref_tal(i_tse_ref, t_tse_ref, pids, label_hat, tau, margin)

    np.testing.assert_allclose(np.asarray(ret["bge_loss"]), np.asarray(ref_bge),
                               rtol=5e-2, atol=2e-2)
    np.testing.assert_allclose(np.asarray(ret["tse_loss"]), np.asarray(ref_tse),
                               rtol=5e-2, atol=2e-2)

    print("KERNEL_OK")
</pallas_src>

<mosaic_0001>
module attributes {stable_mosaic.version = 11 : i64} {
  func.func @_tse_kernel(%arg0: i32, %arg1: i32, %arg2: i32, %arg3: memref<1x8x8x128xbf16, #tpu.memory_space<vmem>>, %arg4: memref<1x128x128xbf16, #tpu.memory_space<vmem>>, %arg5: memref<1x1x128xf32, #tpu.memory_space<vmem>>, %arg6: memref<1x128x256xbf16, #tpu.memory_space<vmem>>, %arg7: memref<1x1x256xf32, #tpu.memory_space<vmem>>, %arg8: memref<1x8x256xf32, #tpu.memory_space<vmem>>, %arg9: memref<8x256xf32, #tpu.memory_space<vmem>>) attributes {dimension_semantics = [#tpu.dimension_semantics<parallel>, #tpu.dimension_semantics<parallel>, #tpu.dimension_semantics<arbitrary>], iteration_bounds = array<i64: 1, 2, 1>, scalar_prefetch = 0 : i64, scratch_operands = 1 : i64, tpu.core_type = #tpu.core_type<tc>, window_params = [{transform_indices = @transform_0, window_bounds = array<i64: 1, 8, 8, 128>}, {transform_indices = @transform_1, window_bounds = array<i64: 1, 128, 128>}, {transform_indices = @transform_2, window_bounds = array<i64: 1, 1, 128>}, {transform_indices = @transform_3, window_bounds = array<i64: 1, 128, 256>}, {transform_indices = @transform_4, window_bounds = array<i64: 1, 1, 256>}, {transform_indices = @transform_5, window_bounds = array<i64: 1, 8, 256>}]} {
    %c0 = arith.constant 0 : index
    %c0_0 = arith.constant 0 : index
    %c0_1 = arith.constant 0 : index
    %c0_2 = arith.constant 0 : index
    %0 = vector.load %arg3[%c0, %c0_0, %c0_1, %c0_2] : memref<1x8x8x128xbf16, #tpu.memory_space<vmem>>, vector<1x8x8x128xbf16>
    %1 = vector.shape_cast %0 : vector<1x8x8x128xbf16> to vector<8x8x128xbf16>
    %2 = vector.shape_cast %1 : vector<8x8x128xbf16> to vector<64x128xbf16>
    %3 = arith.extf %2 : vector<64x128xbf16> to vector<64x128xf32>
    %4 = arith.mulf %3, %3 : vector<64x128xf32>
    %cst = arith.constant dense<0.000000e+00> : vector<64xf32>
    %5 = vector.multi_reduction <add>, %4, %cst [1] : vector<64x128xf32> to vector<64xf32>
    %6 = vector.shape_cast %5 : vector<64xf32> to vector<64x1xf32>
    %cst_3 = arith.constant 9.99999996E-13 : f32
    %7 = vector.broadcast %cst_3 : f32 to vector<64x1xf32>
    %8 = arith.addf %6, %7 : vector<64x1xf32>
    %9 = math.rsqrt %8 : vector<64x1xf32>
    %c0_4 = arith.constant 0 : index
    %c0_5 = arith.constant 0 : index
    %c0_6 = arith.constant 0 : index
    %10 = vector.load %arg4[%c0_4, %c0_5, %c0_6] : memref<1x128x128xbf16, #tpu.memory_space<vmem>>, vector<1x128x128xbf16>
    %11 = vector.shape_cast %10 : vector<1x128x128xbf16> to vector<128x128xbf16>
    %cst_7 = arith.constant dense<0.000000e+00> : vector<64x128xf32>
    %12 = tpu.matmul %2, %11, %cst_7 {dimension_numbers = #tpu.dot_dimension_numbers<[1], [0], [0], [1], [0, 0, 1, 1], [], []>} : vector<64x128xbf16>, vector<128x128xbf16>, vector<64x128xf32> -> vector<64x128xf32>
    %13 = vector.broadcast %9 : vector<64x1xf32> to vector<64x128xf32>
    %14 = arith.mulf %12, %13 : vector<64x128xf32>
    %c0_8 = arith.constant 0 : index
    %c0_9 = arith.constant 0 : index
    %c0_10 = arith.constant 0 : index
    %15 = vector.load %arg5[%c0_8, %c0_9, %c0_10] : memref<1x1x128xf32, #tpu.memory_space<vmem>>, vector<1x1x128xf32>
    %16 = vector.shape_cast %15 : vector<1x1x128xf32> to vector<1x128xf32>
    %17 = vector.broadcast %16 : vector<1x128xf32> to vector<64x128xf32>
    %18 = arith.addf %14, %17 : vector<64x128xf32>
    %cst_11 = arith.constant 0.000000e+00 : f32
    %19 = vector.broadcast %cst_11 : f32 to vector<64x128xf32>
    %20 = arith.maximumf %18, %19 : vector<64x128xf32>
    %21 = arith.truncf %20 : vector<64x128xf32> to vector<64x128xbf16>
    %c0_12 = arith.constant 0 : index
    %c0_13 = arith.constant 0 : index
    %c0_14 = arith.constant 0 : index
    %22 = vector.load %arg6[%c0_12, %c0_13, %c0_14] : memref<1x128x256xbf16, #tpu.memory_space<vmem>>, vector<1x128x256xbf16>
    %23 = vector.shape_cast %22 : vector<1x128x256xbf16> to vector<128x256xbf16>
    %cst_15 = arith.constant dense<0.000000e+00> : vector<64x256xf32>
    %24 = tpu.matmul %21, %23, %cst_15 {dimension_numbers = #tpu.dot_dimension_numbers<[1], [0], [0], [1], [0, 0, 1, 1], [], []>} : vector<64x128xbf16>, vector<128x256xbf16>, vector<64x256xf32> -> vector<64x256xf32>
    %c0_16 = arith.constant 0 : index
    %c0_17 = arith.constant 0 : index
    %c0_18 = arith.constant 0 : index
    %25 = vector.load %arg7[%c0_16, %c0_17, %c0_18] : memref<1x1x256xf32, #tpu.memory_space<vmem>>, vector<1x1x256xf32>
    %26 = vector.shape_cast %25 : vector<1x1x256xf32> to vector<1x256xf32>
    %27 = vector.broadcast %26 : vector<1x256xf32> to vector<64x256xf32>
    %28 = arith.addf %24, %27 : vector<64x256xf32>
    %29 = vector.shape_cast %28 : vector<64x256xf32> to vector<8x8x256xf32>
    %cst_19 = arith.constant dense<0xFF800000> : vector<8x256xf32>
    %30 = vector.multi_reduction <maximumf>, %29, %cst_19 [1] : vector<8x8x256xf32> to vector<8x256xf32>
    %c0_i32 = arith.constant 0 : i32
    %31 = arith.cmpi eq, %arg2, %c0_i32 : i32
    %32 = arith.extui %31 : i1 to i32
    %c0_i32_20 = arith.constant 0 : i32
    %33 = arith.cmpi ne, %32, %c0_i32_20 : i32
    scf.if %33 {
      %c0_25 = arith.constant 0 : index
      %c0_26 = arith.constant 0 : index
      %40 = vector.load %arg9[%c0_25, %c0_26] : memref<8x256xf32, #tpu.memory_space<vmem>>, vector<8x256xf32>
      tpu.vector_store %arg9[%c0_25, %c0_26], %30 {strides = array<i32>} : memref<8x256xf32, #tpu.memory_space<vmem>>, vector<8x256xf32>,
    } else {
    }
    %c0_i32_21 = arith.constant 0 : i32
    %34 = arith.cmpi ne, %arg2, %c0_i32_21 : i32
    %35 = arith.extui %34 : i1 to i32
    %c0_i32_22 = arith.constant 0 : i32
    %36 = arith.cmpi ne, %35, %c0_i32_22 : i32
    scf.if %36 {
      %c0_25 = arith.constant 0 : index
      %c0_26 = arith.constant 0 : index
      %40 = vector.load %arg9[%c0_25, %c0_26] : memref<8x256xf32, #tpu.memory_space<vmem>>, vector<8x256xf32>
      %41 = arith.maximumf %40, %30 : vector<8x256xf32>
      %c0_27 = arith.constant 0 : index
      %c0_28 = arith.constant 0 : index
      %42 = vector.load %arg9[%c0_27, %c0_28] : memref<8x256xf32, #tpu.memory_space<vmem>>, vector<8x256xf32>
      tpu.vector_store %arg9[%c0_27, %c0_28], %41 {strides = array<i32>} : memref<8x256xf32, #tpu.memory_space<vmem>>, vector<8x256xf32>,
    } else {
    }
    %c0_i32_23 = arith.constant 0 : i32
    %37 = arith.cmpi eq, %arg2, %c0_i32_23 : i32
    %38 = arith.extui %37 : i1 to i32
    %c0_i32_24 = arith.constant 0 : i32
    %39 = arith.cmpi ne, %38, %c0_i32_24 : i32
    scf.if %39 {
      %c0_25 = arith.constant 0 : index
      %c0_26 = arith.constant 0 : index
      %40 = vector.load %arg9[%c0_25, %c0_26] : memref<8x256xf32, #tpu.memory_space<vmem>>, vector<8x256xf32>
      %c0_27 = arith.constant 0 : index
      %c0_28 = arith.constant 0 : index
      %c0_29 = arith.constant 0 : index
      %41 = vector.load %arg8[%c0_27, %c0_28, %c0_29] : memref<1x8x256xf32, #tpu.memory_space<vmem>>, vector<1x8x256xf32>
      %42 = vector.shape_cast %41 : vector<1x8x256xf32> to vector<8x256xf32>
      %43 = vector.shape_cast %40 : vector<8x256xf32> to vector<1x8x256xf32>
      tpu.vector_store %arg8[%c0_27, %c0_28, %c0_29], %43 {strides = array<i32>} : memref<1x8x256xf32, #tpu.memory_space<vmem>>, vector<1x8x256xf32>,
    } else {
    }
    return
  }
  func.func @transform_0(%arg0: i32, %arg1: i32, %arg2: i32) -> (i32, i32, i32, i32) {
    %c0_i32 = arith.constant 0 : i32
    %c0_i32_0 = arith.constant 0 : i32
    return %arg1, %arg0, %arg2, %c0_i32 : i32, i32, i32, i32
  }
  func.func @transform_1(%arg0: i32, %arg1: i32, %arg2: i32) -> (i32, i32, i32) {
    %c0_i32 = arith.constant 0 : i32
    %c0_i32_0 = arith.constant 0 : i32
    %c0_i32_1 = arith.constant 0 : i32
    return %arg1, %c0_i32, %c0_i32_0 : i32, i32, i32
  }
  func.func @transform_2(%arg0: i32, %arg1: i32, %arg2: i32) -> (i32, i32, i32) {
    %c0_i32 = arith.constant 0 : i32
    %c0_i32_0 = arith.constant 0 : i32
    %c0_i32_1 = arith.constant 0 : i32
    return %arg1, %c0_i32, %c0_i32_0 : i32, i32, i32
  }
  func.func @transform_3(%arg0: i32, %arg1: i32, %arg2: i32) -> (i32, i32, i32) {
    %c0_i32 = arith.constant 0 : i32
    %c0_i32_0 = arith.constant 0 : i32
    %c0_i32_1 = arith.constant 0 : i32
    return %arg1, %c0_i32, %c0_i32_0 : i32, i32, i32
  }
  func.func @transform_4(%arg0: i32, %arg1: i32, %arg2: i32) -> (i32, i32, i32) {
    %c0_i32 = arith.constant 0 : i32
    %c0_i32_0 = arith.constant 0 : i32
    %c0_i32_1 = arith.constant 0 : i32
    return %arg1, %c0_i32, %c0_i32_0 : i32, i32, i32
  }
  func.func @transform_5(%arg0: i32, %arg1: i32, %arg2: i32) -> (i32, i32, i32) {
    %c0_i32 = arith.constant 0 : i32
    %c0_i32_0 = arith.constant 0 : i32
    return %arg1, %arg0, %c0_i32 : i32, i32, i32
  }
}

</mosaic_0001>

<llo_original>
// kernel: tpu_custom_call.1
$region0: #{tpu_custom_call.1}
  #allocation0 [shape = 'u32[]', space=smem, size = 0x4, offset = 0x4, fixed_abs, tag = 'smem constant byte address 0x4 - core index']
  #allocation1 [shape = 'u32[144,128]{1,0:T(1,128)}', space=vmem, size = 0x12000, scoped, tag = 'internal scratch']
  #allocation2 [shape = 'f32[8,256]{1,0:T(8,128)}', space=vmem, size = 0x2000, scoped, tag = 'scratch operand']
  %s0 = inlined_call_operand.hbm [shape: bf16[2,8,8,128], index: 0, kind: input, shape index: {}]
  %s1 = inlined_call_operand.hbm [shape: bf16[2,128,128], index: 1, kind: input, shape index: {}]
  %s2 = inlined_call_operand.vmem [shape: f32[2,1,128], index: 2, kind: input, shape index: {}]
  %s3 = inlined_call_operand.hbm [shape: bf16[2,128,256], index: 3, kind: input, shape index: {}]
  %s4 = inlined_call_operand.vmem [shape: f32[2,1,256], index: 4, kind: input, shape index: {}]
  %s5 = inlined_call_operand.hbm [shape: f32[2,8,256], index: 5, kind: output, shape index: {}]
  %s6 = sld [smem:[#allocation0]]
  $region77: #{tpu_custom_call.1} parent=0
    _
  %s8 = ssub.s32 1, %s6
  %s9 = scalar_select 0, %s8, %s6
  $region1: #{tpu_custom_call.1} parent=0
    #allocation3 [shape = 'u8[32768]{0}', space=vmem, size = 0x8000, scoped, tag = 'input window, operand 0']
    #allocation4 [shape = 's32[2]{0}', space=sflag, size = 0x8, scoped, tag = 'scoped memory for tpu_custom_call.1']
    #allocation5 [shape = 's32[2]{0}', space=sflag, size = 0x8, scoped, tag = 'scoped memory for tpu_custom_call.1']
    #allocation6 [shape = 'u8[65536]{0}', space=vmem, size = 0x10000, scoped, tag = 'input window, operand 1']
    #allocation7 [shape = 's32[2]{0}', space=sflag, size = 0x8, scoped, tag = 'scoped memory for tpu_custom_call.1']
    #allocation8 [shape = 'u8[131072]{0}', space=vmem, size = 0x20000, scoped, tag = 'input window, operand 3']
    #allocation9 [shape = 'u8[16384]{0}', space=vmem, size = 0x4000, scoped, tag = 'output window, operand 0']
    %10 = vsyncpa [#allocation4], 0
    %s11 = scalar_lea.sflag [#allocation4], 1
    %12 = vsyncpa %s11, 0
    %13 = vsyncpa [#allocation7], 0
    %s14 = scalar_lea.sflag [#allocation7], 1
    %15 = vsyncpa %s14, 0
    %16 = vsyncpa [#allocation5], 0
    %s17 = scalar_lea.sflag [#allocation5], 1
    %18 = vsyncpa %s17, 0
    loop: start=0, step=1, limit=4
    $region2: #{tpu_custom_call.1} parent=1 // loop_pre_header
      _
    $region3: #{tpu_custom_call.1} parent=1 // loop_header
      %s20 = sphi 0, %s24
      %p21 = scmp.ge.s32.totalorder %s20, 4
      %s27 = sphi 0, %s46
      %s28 = sphi 0, %s42
      %s29 = sphi 0, %s38
      %s30 = sphi 0, %s27
      %s31 = sphi 0, %s28
      %s32 = sphi 0, %s29
      %s33 = sphi 0, %s30
      %s34 = sphi 0, %s31
      %s35 = sphi 0, %s32
      %s53 = sphi 0, %s55
      %s56 = sphi 0, %s53
      %s57 = sphi 0, %s56
      %s73 = sphi 0, %s57
      %s79 = sphi 0, %s81
      %s82 = sphi 0, %s79
      %s83 = sphi 0, %s82
      %s99 = sphi 0, %s83
      %s105 = sphi 0, %s107
      %s108 = sphi 0, %s105
      %s109 = sphi 0, %s108
      %s125 = sphi 0, %s109
      %s131 = sphi 0, %s133
      %s134 = sphi 0, %s131
      %s135 = sphi 0, %s134
      %s151 = sphi 0, %s135
      %s157 = sphi 0, %s159
      %s160 = sphi 0, %s157
      %s161 = sphi 0, %s160
      %s177 = sphi 0, %s161
      %s185 = sphi 0, %s187
      %s188 = sphi 0, %s185
      %s189 = sphi 0, %s188
      %s205 = sphi 0, %s189
    $region4: #{tpu_custom_call.1} parent=1 // loop_header_branch
      %23 = sbr.rel (%p21) target = $region8
    $region5: #{tpu_custom_call.1} parent=1 // loop_body
      %s25 = ssub.s32 %s20, 1
      %s26 = ssub.s32 %s20, 2
      %s36 = sadd.s32 1, %s29
      %p37 = scmp.ge.s32.totalorder %s36, 1
      %s38 = scalar_select %p37, 0, %s36
      %s39 = sadd.s32 1, %s28
      %s40 = scalar_select %p37, %s39, %s28
      %p41 = scmp.ge.s32.totalorder %s40, 2
      %s42 = scalar_select %p41, 0, %s40
      %s43 = sadd.s32 1, %s27
      %s44 = scalar_select %p41, %s43, %s27
      %p45 = scmp.ge.s32.totalorder %s44, 1
      %s46 = scalar_select %p45, 0, %s44
      %s47 = ssub.s32 %s28, %s42
      %s48 = ssub.s32 %s27, %s46
      %s49 = sor.u32 %s47, %s48
      %s50 = ssub.s32 %s29, %s38
      %s51 = sor.u32 %s49, %s50
      %p52 = scmp.eq.s32.totalorder %s51, 0
      %s54 = sadd.s32 %s53, 1
      %s55 = scalar_select %p52, %s53, %s54
      %p58 = pneg %p52
      %p59 = scmp.eq.s32.totalorder %s20, 1
      %p60 = por %p58, %p59
      %p61 = scmp.ne.s32.totalorder %s53, %s56
      %p62 = scmp.eq.s32.totalorder %s20, 0
      %p63 = por %p61, %p62
      %p64 = scmp.ne.s32.totalorder %s53, %s56
      %p65 = scmp.eq.s32.totalorder %s25, 1
      %p66 = por %p64, %p65
      %p67 = scmp.ne.s32.totalorder %s56, %s57
      %p68 = scmp.eq.s32.totalorder %s25, 0
      %p69 = por %p67, %p68
      %p70 = scmp.ne.s32.totalorder %s56, %s57
      %p71 = scmp.eq.s32.totalorder %s26, 1
      %p72 = por %p70, %p71
      %p74 = scmp.ne.s32.totalorder %s57, %s73
      %p75 = scmp.eq.s32.totalorder %s26, 0
      %p76 = por %p74, %p75
      %s77 = ssub.s32 %s28, %s42
      %p78 = scmp.eq.s32.totalorder %s77, 0
      %s80 = sadd.s32 %s79, 1
      %s81 = scalar_select %p78, %s79, %s80
      %p84 = pneg %p78
      %p85 = scmp.eq.s32.totalorder %s20, 1
      %p86 = por %p84, %p85
      %p87 = scmp.ne.s32.totalorder %s79, %s82
      %p88 = scmp.eq.s32.totalorder %s20, 0
      %p89 = por %p87, %p88
      %p90 = scmp.ne.s32.totalorder %s79, %s82
      %p91 = scmp.eq.s32.totalorder %s25, 1
      %p92 = por %p90, %p91
      %p93 = scmp.ne.s32.totalorder %s82, %s83
      %p94 = scmp.eq.s32.totalorder %s25, 0
      %p95 = por %p93, %p94
      %p96 = scmp.ne.s32.totalorder %s82, %s83
      %p97 = scmp.eq.s32.totalorder %s26, 1
      %p98 = por %p96, %p97
      %p100 = scmp.ne.s32.totalorder %s83, %s99
      %p101 = scmp.eq.s32.totalorder %s26, 0
      %p102 = por %p100, %p101
      %s103 = ssub.s32 %s28, %s42
      %p104 = scmp.eq.s32.totalorder %s103, 0
      %s106 = sadd.s32 %s105, 1
      %s107 = scalar_select %p104, %s105, %s106
      %p110 = pneg %p104
      %p111 = scmp.eq.s32.totalorder %s20, 1
      %p112 = por %p110, %p111
      %p113 = scmp.ne.s32.totalorder %s105, %s108
      %p114 = scmp.eq.s32.totalorder %s20, 0
      %p115 = por %p113, %p114
      %p116 = scmp.ne.s32.totalorder %s105, %s108
      %p117 = scmp.eq.s32.totalorder %s25, 1
      %p118 = por %p116, %p117
      %p119 = scmp.ne.s32.totalorder %s108, %s109
      %p120 = scmp.eq.s32.totalorder %s25, 0
      %p121 = por %p119, %p120
      %p122 = scmp.ne.s32.totalorder %s108, %s109
      %p123 = scmp.eq.s32.totalorder %s26, 1
      %p124 = por %p122, %p123
      %p126 = scmp.ne.s32.totalorder %s109, %s125
      %p127 = scmp.eq.s32.totalorder %s26, 0
      %p128 = por %p126, %p127
      %s129 = ssub.s32 %s28, %s42
      %p130 = scmp.eq.s32.totalorder %s129, 0
      %s132 = sadd.s32 %s131, 1
      %s133 = scalar_select %p130, %s131, %s132
      %p136 = pneg %p130
      %p137 = scmp.eq.s32.totalorder %s20, 1
      %p138 = por %p136, %p137
      %p139 = scmp.ne.s32.totalorder %s131, %s134
      %p140 = scmp.eq.s32.totalorder %s20, 0
      %p141 = por %p139, %p140
      %p142 = scmp.ne.s32.totalorder %s131, %s134
      %p143 = scmp.eq.s32.totalorder %s25, 1
      %p144 = por %p142, %p143
      %p145 = scmp.ne.s32.totalorder %s134, %s135
      %p146 = scmp.eq.s32.totalorder %s25, 0
      %p147 = por %p145, %p146
      %p148 = scmp.ne.s32.totalorder %s134, %s135
      %p149 = scmp.eq.s32.totalorder %s26, 1
      %p150 = por %p148, %p149
      %p152 = scmp.ne.s32.totalorder %s135, %s151
      %p153 = scmp.eq.s32.totalorder %s26, 0
      %p154 = por %p152, %p153
      %s155 = ssub.s32 %s28, %s42
      %p156 = scmp.eq.s32.totalorder %s155, 0
      %s158 = sadd.s32 %s157, 1
      %s159 = scalar_select %p156, %s157, %s158
      %p162 = pneg %p156
      %p163 = scmp.eq.s32.totalorder %s20, 1
      %p164 = por %p162, %p163
      %p165 = scmp.ne.s32.totalorder %s157, %s160
      %p166 = scmp.eq.s32.totalorder %s20, 0
      %p167 = por %p165, %p166
      %p168 = scmp.ne.s32.totalorder %s157, %s160
      %p169 = scmp.eq.s32.totalorder %s25, 1
      %p170 = por %p168, %p169
      %p171 = scmp.ne.s32.totalorder %s160, %s161
      %p172 = scmp.eq.s32.totalorder %s25, 0
      %p173 = por %p171, %p172
      %p174 = scmp.ne.s32.totalorder %s160, %s161
      %p175 = scmp.eq.s32.totalorder %s26, 1
      %p176 = por %p174, %p175
      %p178 = scmp.ne.s32.totalorder %s161, %s177
      %p179 = scmp.eq.s32.totalorder %s26, 0
      %p180 = por %p178, %p179
      %s181 = ssub.s32 %s28, %s42
      %s182 = ssub.s32 %s27, %s46
      %s183 = sor.u32 %s181, %s182
      %p184 = scmp.eq.s32.totalorder %s183, 0
      %s186 = sadd.s32 %s185, 1
      %s187 = scalar_select %p184, %s185, %s186
      %p190 = pneg %p184
      %p191 = scmp.eq.s32.totalorder %s20, 1
      %p192 = por %p190, %p191
      %p193 = scmp.ne.s32.totalorder %s185, %s188
      %p194 = scmp.eq.s32.totalorder %s20, 0
      %p195 = por %p193, %p194
      %p196 = scmp.ne.s32.totalorder %s185, %s188
      %p197 = scmp.eq.s32.totalorder %s25, 1
      %p198 = por %p196, %p197
      %p199 = scmp.ne.s32.totalorder %s188, %s189
      %p200 = scmp.eq.s32.totalorder %s25, 0
      %p201 = por %p199, %p200
      %p202 = scmp.ne.s32.totalorder %s188, %s189
      %p203 = scmp.eq.s32.totalorder %s26, 1
      %p204 = por %p202, %p203
      %p206 = scmp.ne.s32.totalorder %s189, %s205
      %p207 = scmp.eq.s32.totalorder %s26, 0
      %p208 = por %p206, %p207
      %p209 = scmp.le.s32.totalorder 1, %s20
      %p210 = scmp.lt.s32.totalorder %s20, 3
      %p211 = pnand %p209, %p210
      %p212 = pneg %p211
      // Predicated region
      $region9: #{tpu_custom_call.1} parent=5 // pred_check
        _
      $region10: #{tpu_custom_call.1} parent=5 // pred_check_branch
        %214 = sbr.rel (%p211) target = $region12
      $region11: #{tpu_custom_call.1} parent=5 // pred_region
        %s215 = ssub.s32 %s20, 1
      $region12: #{tpu_custom_call.1} parent=5 // pred_fallthru
        _
      %p216 = scmp.lt.s32.totalorder %s20, 2
      // Predicated region
      $region13: #{tpu_custom_call.1} parent=5 // pred_check
        %p217 = pneg %p216
      $region14: #{tpu_custom_call.1} parent=5 // pred_check_branch
        %219 = sbr.rel (%p217) target = $region16
      $region15: #{tpu_custom_call.1} parent=5 // pred_region
        // Predicated region
        $region17: #{tpu_custom_call.1} parent=15 // pred_check
          %p220 = pneg %p63
        $region18: #{tpu_custom_call.1} parent=15 // pred_check_branch
          %222 = sbr.rel (%p220) target = $region20
        $region19: #{tpu_custom_call.1} parent=15 // pred_region
          %s223 = sand.u32 %s53, 1
          %s224 = scalar_lea.sflag [#allocation4], %s223
          %s225 = sand.u32 %s53, 1
          %s226 = smul.addr %s225, 32
          %s227 = scalar_lea.vmem [#allocation3], %s226
          %s228 = smul.u32 8, %s27
          %s230 = ssub.s32 512, 512
          %231 = vsyncadd %s224, %s230
          %s232 = sadd.s32 %s29, %s228
          %s233 = smul.addr %s28, 8
          %s234 = sadd.s32 %s232, %s233
          %s235 = smul.addr %s234, 64
          %s236 = scalar_lea.hbm %s0, %s235
          %s237 = sshll.u32 %s227, 4
          %s238 = int_to_ptr.vmem [resolvable:$true] %s237
          %243 = dma.hbm_to_vmem [thread:$0]  %s236, 512, %s238, %s224, 64, 64, 4
        $region20: #{tpu_custom_call.1} parent=15 // pred_fallthru
          _
        // Predicated region
        $region21: #{tpu_custom_call.1} parent=15 // pred_check
          %p244 = pneg %p89
        $region22: #{tpu_custom_call.1} parent=15 // pred_check_branch
          %246 = sbr.rel (%p244) target = $region24
        $region23: #{tpu_custom_call.1} parent=15 // pred_region
          %s247 = sand.u32 %s20, 1
          %s248 = scalar_lea.sflag [#allocation7], %s247
          %s249 = sand.u32 %s79, 1
          %s250 = smul.addr %s249, 64
          %s251 = scalar_lea.vmem [#allocation6], %s250
          %s253 = ssub.s32 1024, 1024
          %254 = vsyncadd %s248, %s253
          %s255 = smul.addr %s28, 16
          %s256 = smul.addr %s255, 64
          %s257 = scalar_lea.hbm %s1, %s256
          %s258 = sshll.u32 %s251, 4
          %s259 = int_to_ptr.vmem [resolvable:$true] %s258
          %264 = dma.hbm_to_vmem [thread:$0]  %s257, 1024, %s259, %s248, 64, 64, 4
        $region24: #{tpu_custom_call.1} parent=15 // pred_fallthru
          _
        // Predicated region
        $region25: #{tpu_custom_call.1} parent=15 // pred_check
          %p265 = pneg %p115
        $region26: #{tpu_custom_call.1} parent=15 // pred_check_branch
          %267 = sbr.rel (%p265) target = $region28
        $region27: #{tpu_custom_call.1} parent=15 // pred_region
          %p268 = scmp.lt.s32.totalorder %s28, 1
          %s269 = scalar_select %p268, %s28, 1
          %s270 = scalar_lea.vmem %s2, %s269
        $region28: #{tpu_custom_call.1} parent=15 // pred_fallthru
          _
        // Predicated region
        $region29: #{tpu_custom_call.1} parent=15 // pred_check
          %p271 = pneg %p141
        $region30: #{tpu_custom_call.1} parent=15 // pred_check_branch
          %273 = sbr.rel (%p271) target = $region32
        $region31: #{tpu_custom_call.1} parent=15 // pred_region
          %s274 = sand.u32 %s20, 1
          %s275 = scalar_lea.sflag [#allocation7], %s274
          %s276 = sand.u32 %s131, 1
          %s277 = smul.addr %s276, 128
          %s278 = scalar_lea.vmem [#allocation8], %s277
          %s280 = ssub.s32 2048, 2048
          %281 = vsyncadd %s275, %s280
          %s282 = smul.addr %s28, 32
          %s283 = smul.addr %s282, 64
          %s284 = scalar_lea.hbm %s3, %s283
          %s285 = sshll.u32 %s278, 4
          %s286 = int_to_ptr.vmem [resolvable:$true] %s285
          %291 = dma.hbm_to_vmem [thread:$0]  %s284, 2048, %s286, %s275, 128, 128, 8
        $region32: #{tpu_custom_call.1} parent=15 // pred_fallthru
          _
        // Predicated region
        $region33: #{tpu_custom_call.1} parent=15 // pred_check
          %p292 = pneg %p167
        $region34: #{tpu_custom_call.1} parent=15 // pred_check_branch
          %294 = sbr.rel (%p292) target = $region36
        $region35: #{tpu_custom_call.1} parent=15 // pred_region
          %p295 = scmp.lt.s32.totalorder %s28, 1
          %s296 = scalar_select %p295, %s28, 1
          %s297 = smul.addr %s296, 2
          %s298 = scalar_lea.vmem %s4, %s297
        $region36: #{tpu_custom_call.1} parent=15 // pred_fallthru
          _
      $region16: #{tpu_custom_call.1} parent=5 // pred_fallthru
        _
      %p299 = scmp.le.s32.totalorder 1, %s20
      %p300 = scmp.lt.s32.totalorder %s20, 3
      %p301 = pnand %p299, %p300
      %p302 = pneg %p301
      // Predicated region
      $region37: #{tpu_custom_call.1} parent=5 // pred_check
        _
      $region38: #{tpu_custom_call.1} parent=5 // pred_check_branch
        %304 = sbr.rel (%p301) target = $region40
      $region39: #{tpu_custom_call.1} parent=5 // pred_region
        %s305 = ssub.s32 %s20, 1
        %s306 = sand.u32 %s56, 1
        %s307 = scalar_lea.sflag [#allocation4], %s306
        %s308 = sand.u32 %s56, 1
        %s309 = smul.addr %s308, 32
        %s310 = scalar_lea.vmem [#allocation3], %s309
        // Predicated region
        $region41: #{tpu_custom_call.1} parent=39 // pred_check
          %p311 = pneg %p69
        $region42: #{tpu_custom_call.1} parent=39 // pred_check_branch
          %313 = sbr.rel (%p311) target = $region44
        $region43: #{tpu_custom_call.1} parent=39 // pred_region
          %314 = dma.done %s307, 512
        $region44: #{tpu_custom_call.1} parent=39 // pred_fallthru
          _
        %s315 = sand.u32 %s25, 1
        %s316 = scalar_lea.sflag [#allocation7], %s315
        %s317 = sand.u32 %s82, 1
        %s318 = smul.addr %s317, 64
        %s319 = scalar_lea.vmem [#allocation6], %s318
        // Predicated region
        $region45: #{tpu_custom_call.1} parent=39 // pred_check
          %p320 = pneg %p95
        $region46: #{tpu_custom_call.1} parent=39 // pred_check_branch
          %322 = sbr.rel (%p320) target = $region48
        $region47: #{tpu_custom_call.1} parent=39 // pred_region
          %323 = dma.done %s316, 1024
        $region48: #{tpu_custom_call.1} parent=39 // pred_fallthru
          _
        %s324 = sand.u32 %s25, 1
        %s325 = scalar_lea.sflag [#allocation7], %s324
        %s326 = sand.u32 %s134, 1
        %s327 = smul.addr %s326, 128
        %s328 = scalar_lea.vmem [#allocation8], %s327
        // Predicated region
        $region49: #{tpu_custom_call.1} parent=39 // pred_check
          %p329 = pneg %p147
        $region50: #{tpu_custom_call.1} parent=39 // pred_check_branch
          %331 = sbr.rel (%p329) target = $region52
        $region51: #{tpu_custom_call.1} parent=39 // pred_region
          %332 = dma.done %s325, 2048
        $region52: #{tpu_custom_call.1} parent=39 // pred_fallthru
          _
        %s333 = sand.u32 %s56, 1
        %s334 = scalar_lea.sflag [#allocation4], %s333
        %s335 = sand.u32 %s56, 1
        %s336 = smul.addr %s335, 32
        %s337 = scalar_lea.vmem [#allocation3], %s336
        %p338 = pneg %p69
        %p339 = pneg %p66
        %s340 = sand.u32 %s25, 1
        %s341 = scalar_lea.sflag [#allocation7], %s340
        %s342 = sand.u32 %s82, 1
        %s343 = smul.addr %s342, 64
        %s344 = scalar_lea.vmem [#allocation6], %s343
        %p345 = pneg %p95
        %p346 = pneg %p92
        %p347 = scmp.lt.s32.totalorder %s31, 1
        %s348 = scalar_select %p347, %s31, 1
        %s349 = scalar_lea.vmem %s2, %s348
        %p350 = pneg %p121
        %p351 = pneg %p118
        %s352 = sand.u32 %s25, 1
        %s353 = scalar_lea.sflag [#allocation7], %s352
        %s354 = sand.u32 %s134, 1
        %s355 = smul.addr %s354, 128
        %s356 = scalar_lea.vmem [#allocation8], %s355
        %p357 = pneg %p147
        %p358 = pneg %p144
        %p359 = scmp.lt.s32.totalorder %s31, 1
        %s360 = scalar_select %p359, %s31, 1
        %s361 = smul.addr %s360, 2
        %s362 = scalar_lea.vmem %s4, %s361
        %p363 = pneg %p173
        %p364 = pneg %p170
        %p365 = pneg %p201
        %p366 = pneg %p198
        %s367 = sand.u32 %s188, 1
        %s368 = scalar_lea.sflag [#allocation5], %s367
        %s369 = sand.u32 %s188, 1
        %s370 = smul.addr %s369, 16
        %s371 = scalar_lea.vmem [#allocation9], %s370
        %s372 = smul.u32 8, %s30
        %p373 = scmp.lt.s32.totalorder %s31, 1
        %s374 = scalar_select %p373, %s31, 1
        %s375 = scalar_lea.vmem %s2, %s374
        %p376 = scmp.lt.s32.totalorder %s31, 1
        %s377 = scalar_select %p376, %s31, 1
        %s378 = smul.addr %s377, 2
        %s379 = scalar_lea.vmem %s4, %s378
        %v381 = vld [vmem:[%s310] sm:$0xf]
        %v382 = vld [vmem:[%s310 + $0x4] sm:$0xf]
        %v383 = vld [vmem:[%s310 + $0x8] sm:$0xf]
        %v384 = vld [vmem:[%s310 + $0xc] sm:$0xf]
        %v385 = vld [vmem:[%s310 + $0x10] sm:$0xf]
        %v386 = vld [vmem:[%s310 + $0x14] sm:$0xf]
        %v387 = vld [vmem:[%s310 + $0x18] sm:$0xf]
        %v388 = vld [vmem:[%s310 + $0x1c] sm:$0xf]
        %v389 = vunpack.c.l.bf16 %v381
        %v390 = vunpack.c.l.bf16 %v382
        %v391 = vunpack.c.l.bf16 %v383
        %v392 = vunpack.c.l.bf16 %v384
        %v393 = vunpack.c.l.bf16 %v385
        %v394 = vunpack.c.l.bf16 %v386
        %v395 = vunpack.c.l.bf16 %v387
        %v396 = vunpack.c.l.bf16 %v388
        %v397 = vmul.f32 %v389, %v389
        %v398 = vmul.f32 %v390, %v390
        %v399 = vmul.f32 %v391, %v391
        %v400 = vmul.f32 %v392, %v392
        %v401 = vmul.f32 %v393, %v393
        %v402 = vmul.f32 %v394, %v394
        %v403 = vmul.f32 %v395, %v395
        %v404 = vmul.f32 %v396, %v396
        %405 = vadd.xlane.f32.xlu0 %v397
        %v406 = vpop.xlane.xlu0 %405
        %407 = vadd.xlane.f32.xlu0 %v398
        %v408 = vpop.xlane.xlu0 %407
        %409 = vadd.xlane.f32.xlu0 %v399
        %v410 = vpop.xlane.xlu0 %409
        %411 = vadd.xlane.f32.xlu0 %v400
        %v412 = vpop.xlane.xlu0 %411
        %413 = vadd.xlane.f32.xlu0 %v401
        %v414 = vpop.xlane.xlu0 %413
        %415 = vadd.xlane.f32.xlu0 %v402
        %v416 = vpop.xlane.xlu0 %415
        %417 = vadd.xlane.f32.xlu0 %v403
        %v418 = vpop.xlane.xlu0 %417
        %419 = vadd.xlane.f32.xlu0 %v404
        %v420 = vpop.xlane.xlu0 %419
        %v421 = vadd.f32 %v406, 1e-12
        %v422 = vadd.f32 %v408, 1e-12
        %v423 = vadd.f32 %v410, 1e-12
        %v424 = vadd.f32 %v412, 1e-12
        %v425 = vadd.f32 %v414, 1e-12
        %v426 = vadd.f32 %v416, 1e-12
        %v427 = vadd.f32 %v418, 1e-12
        %v428 = vadd.f32 %v420, 1e-12
        %v429 = vrsqrt.pop %v421
        %v430 = vrsqrt.pop %v422
        %v431 = vrsqrt.pop %v423
        %v432 = vrsqrt.pop %v424
        %v433 = vrsqrt.pop %v425
        %v434 = vrsqrt.pop %v426
        %v435 = vrsqrt.pop %v427
        %v436 = vrsqrt.pop %v428
        %v437 = vld [vmem:[%s319] sm:$0xf]
        %v438 = vld [vmem:[%s319 + $0x4] sm:$0xf]
        %v439 = vld [vmem:[%s319 + $0x8] sm:$0xf]
        %v440 = vld [vmem:[%s319 + $0xc] sm:$0xf]
        %v441 = vld [vmem:[%s319 + $0x10] sm:$0xf]
        %v442 = vld [vmem:[%s319 + $0x14] sm:$0xf]
        %v443 = vld [vmem:[%s319 + $0x18] sm:$0xf]
        %v444 = vld [vmem:[%s319 + $0x1c] sm:$0xf]
        %v445 = vld [vmem:[%s319 + $0x20] sm:$0xf]
        %v446 = vld [vmem:[%s319 + $0x24] sm:$0xf]
        %v447 = vld [vmem:[%s319 + $0x28] sm:$0xf]
        %v448 = vld [vmem:[%s319 + $0x2c] sm:$0xf]
        %v449 = vld [vmem:[%s319 + $0x30] sm:$0xf]
        %v450 = vld [vmem:[%s319 + $0x34] sm:$0xf]
        %v451 = vld [vmem:[%s319 + $0x38] sm:$0xf]
        %v452 = vld [vmem:[%s319 + $0x3c] sm:$0xf]
        %v461 = vunpack.c.l.b16 %v381
        %v462 = vunpack.c.l.b16 %v382
        %v463 = vunpack.c.l.b16 %v383
        %v464 = vunpack.c.l.b16 %v384
        %v465 = vunpack.c.l.b16 %v385
        %v466 = vunpack.c.l.b16 %v386
        %v467 = vunpack.c.l.b16 %v387
        %v468 = vunpack.c.l.b16 %v388
        %v469 = vpack.c.b16 %v462, %v461
        %v470 = vpack.c.b16 %v464, %v463
        %v471 = vpack.c.b16 %v466, %v465
        %v472 = vpack.c.b16 %v468, %v467
        %v493 = vunpack.c.l.b16 %v437
        %v494 = vunpack.c.l.b16 %v438
        %v495 = vunpack.c.l.b16 %v439
        %v496 = vunpack.c.l.b16 %v440
        %v497 = vunpack.c.l.b16 %v441
        %v498 = vunpack.c.l.b16 %v442
        %v499 = vunpack.c.l.b16 %v443
        %v500 = vunpack.c.l.b16 %v444
        %v501 = vunpack.c.l.b16 %v445
        %v502 = vunpack.c.l.b16 %v446
        %v503 = vunpack.c.l.b16 %v447
        %v504 = vunpack.c.l.b16 %v448
        %v505 = vunpack.c.l.b16 %v449
        %v506 = vunpack.c.l.b16 %v450
        %v507 = vunpack.c.l.b16 %v451
        %v508 = vunpack.c.l.b16 %v452
        %v509 = vpack.c.b16 %v494, %v493
        %v510 = vpack.c.b16 %v496, %v495
        %v511 = vpack.c.b16 %v498, %v497
        %v512 = vpack.c.b16 %v500, %v499
        %v513 = vpack.c.b16 %v502, %v501
        %v514 = vpack.c.b16 %v504, %v503
        %v515 = vpack.c.b16 %v506, %v505
        %v516 = vpack.c.b16 %v508, %v507
        %525 = vmatprep.subr.bf16.mxu0 0
        %526 = vmatpush1.bf16.msra.mxu0 %v516
        %527 = vmatprep.subr.bf16.mxu0 0
        %528 = vmatpush1.bf16.msra.mxu0 %v515
        %529 = vmatprep.subr.bf16.mxu0 0
        %530 = vmatpush1.bf16.msra.mxu0 %v514
        %531 = vmatprep.subr.bf16.mxu0 0
        %532 = vmatpush1.bf16.msra.mxu0 %v513
        %533 = vmatprep.subr.bf16.mxu0 0
        %534 = vmatpush1.bf16.msra.mxu0 %v512
        %535 = vmatprep.subr.bf16.mxu0 0
        %536 = vmatpush1.bf16.msra.mxu0 %v511
        %537 = vmatprep.subr.bf16.mxu0 0
        %538 = vmatpush1.bf16.msra.mxu0 %v510
        %539 = vmatprep.subr.bf16.mxu0 0
        %540 = vmatpush1.bf16.msra.mxu0 %v509
        %541 = vmatprep.subr.bf16.mxu0 0
        %542 = vmatpush2.bf16.msra.mxu0 0
        %543 = vmatprep.subr.bf16.mxu0 0
        %544 = vmatpush2.bf16.msra.mxu0 0
        %545 = vmatprep.subr.bf16.mxu0 0
        %546 = vmatpush2.bf16.msra.mxu0 0
        %547 = vmatprep.subr.bf16.mxu0 0
        %548 = vmatpush2.bf16.msra.mxu0 0
        %549 = vmatprep.subr.bf16.mxu0 0
        %550 = vmatpush2.bf16.msra.mxu0 0
        %551 = vmatprep.subr.bf16.mxu0 0
        %552 = vmatpush2.bf16.msra.mxu0 0
        %553 = vmatprep.subr.bf16.mxu0 0
        %554 = vmatpush2.bf16.msra.mxu0 0
        %555 = vmatprep.subr.bf16.mxu0 0
        %556 = vmatpush2.bf16.msra.mxu0 0
        %557 = vmatprep.mubr.bf16.mxu0 0
        %558 = vmatmul.mubr.bf16.gmra.mxu0 %v469
        %v559 = vpop.f32.mrf.mxu0
        %v560 = vadd.f32 0.0, %v559
        %v561 = vpop.f32.mrf.mxu0
        %v562 = vpop.f32.mrf.mxu0
        %v563 = vadd.f32 0.0, %v562
        %v564 = vpop.f32.mrf.mxu0
        %565 = vmatprep.mubr.bf16.mxu0 0
        %566 = vmatmul.mubr.bf16.gmra.mxu0 %v470
        %v567 = vpop.f32.mrf.mxu0
        %v568 = vadd.f32 0.0, %v567
        %v569 = vpop.f32.mrf.mxu0
        %v570 = vpop.f32.mrf.mxu0
        %v571 = vadd.f32 0.0, %v570
        %v572 = vpop.f32.mrf.mxu0
        %573 = vmatprep.mubr.bf16.mxu0 0
        %574 = vmatmul.mubr.bf16.gmra.mxu0 %v471
        %v575 = vpop.f32.mrf.mxu0
        %v576 = vadd.f32 0.0, %v575
        %v577 = vpop.f32.mrf.mxu0
        %v578 = vpop.f32.mrf.mxu0
        %v579 = vadd.f32 0.0, %v578
        %v580 = vpop.f32.mrf.mxu0
        %581 = vmatprep.mubr.bf16.mxu0 0
        %582 = vmatmul.mubr.bf16.gmra.mxu0 %v472
        %v583 = vpop.f32.mrf.mxu0
        %v584 = vadd.f32 0.0, %v583
        %v585 = vpop.f32.mrf.mxu0
        %v586 = vpop.f32.mrf.mxu0
        %v587 = vadd.f32 0.0, %v586
        %v588 = vpop.f32.mrf.mxu0
        %589 = vdwg.mxu0
        %v590 = vmul.f32 %v560, %v429
        %v591 = vmul.f32 %v563, %v430
        %v592 = vmul.f32 %v568, %v431
        %v593 = vmul.f32 %v571, %v432
        %v594 = vmul.f32 %v576, %v433
        %v595 = vmul.f32 %v579, %v434
        %v596 = vmul.f32 %v584, %v435
        %v597 = vmul.f32 %v587, %v436
        %v598 = vld [vmem:[%s375] sm:$0x1]
        %v600 = vlaneseq
        %v601 = vshrl.u32 %v600, 7
        %v602 = vsub.s32 0, %v601
        %v603 = vrot.slane %v598, %v602
        %v605 = vadd.f32 %v590, %v603
        %v606 = vadd.f32 %v591, %v603
        %v607 = vadd.f32 %v592, %v603
        %v608 = vadd.f32 %v593, %v603
        %v609 = vadd.f32 %v594, %v603
        %v610 = vadd.f32 %v595, %v603
        %v611 = vadd.f32 %v596, %v603
        %v612 = vadd.f32 %v597, %v603
        %v613 = vmax.f32 %v605, 0.0
        %v614 = vmax.f32 %v606, 0.0
        %v615 = vmax.f32 %v607, 0.0
        %v616 = vmax.f32 %v608, 0.0
        %v617 = vmax.f32 %v609, 0.0
        %v618 = vmax.f32 %v610, 0.0
        %v619 = vmax.f32 %v611, 0.0
        %v620 = vmax.f32 %v612, 0.0
        %v621 = vpack.c.bf16 %v614, %v613
        %v622 = vpack.c.bf16 %v616, %v615
        %v623 = vpack.c.bf16 %v618, %v617
        %v624 = vpack.c.bf16 %v620, %v619
        %v625 = vld [vmem:[%s328] sm:$0xff]
        %v626 = vld [vmem:[%s328 + $0x8] sm:$0xff]
        %v627 = vld [vmem:[%s328 + $0x10] sm:$0xff]
        %v628 = vld [vmem:[%s328 + $0x18] sm:$0xff]
        %v629 = vld [vmem:[%s328 + $0x20] sm:$0xff]
        %v630 = vld [vmem:[%s328 + $0x28] sm:$0xff]
        %v631 = vld [vmem:[%s328 + $0x30] sm:$0xff]
        %v632 = vld [vmem:[%s328 + $0x38] sm:$0xff]
        %v633 = vld [vmem:[%s328 + $0x40] sm:$0xff]
        %v634 = vld [vmem:[%s328 + $0x48] sm:$0xff]
        %v635 = vld [vmem:[%s328 + $0x50] sm:$0xff]
        %v636 = vld [vmem:[%s328 + $0x58] sm:$0xff]
        %v637 = vld [vmem:[%s328 + $0x60] sm:$0xff]
        %v638 = vld [vmem:[%s328 + $0x68] sm:$0xff]
        %v639 = vld [vmem:[%s328 + $0x70] sm:$0xff]
        %v640 = vld [vmem:[%s328 + $0x78] sm:$0xff]
        %v641 = vld [vmem:[%s379] sm:$0x3]
        %v643 = vlaneseq
        %v644 = vshrl.u32 %v643, 7
        %v645 = vsub.s32 0, %v644
        %v646 = vrot.slane %v641, %v645
        %v647 = vlaneseq
        %v648 = vshrl.u32 %v647, 7
        %v649 = vsub.s32 1, %v648
        %v650 = vrot.slane %v641, %v649
        %v669 = vunpack.c.l.b16 %v625
        %v670 = vunpack.c.h.b16 %v625
        %v671 = vunpack.c.l.b16 %v626
        %v672 = vunpack.c.h.b16 %v626
        %v673 = vunpack.c.l.b16 %v627
        %v674 = vunpack.c.h.b16 %v627
        %v675 = vunpack.c.l.b16 %v628
        %v676 = vunpack.c.h.b16 %v628
        %v677 = vunpack.c.l.b16 %v629
        %v678 = vunpack.c.h.b16 %v629
        %v679 = vunpack.c.l.b16 %v630
        %v680 = vunpack.c.h.b16 %v630
        %v681 = vunpack.c.l.b16 %v631
        %v682 = vunpack.c.h.b16 %v631
        %v683 = vunpack.c.l.b16 %v632
        %v684 = vunpack.c.h.b16 %v632
        %v685 = vunpack.c.l.b16 %v633
        %v686 = vunpack.c.h.b16 %v633
        %v687 = vunpack.c.l.b16 %v634
        %v688 = vunpack.c.h.b16 %v634
        %v689 = vunpack.c.l.b16 %v635
        %v690 = vunpack.c.h.b16 %v635
        %v691 = vunpack.c.l.b16 %v636
        %v692 = vunpack.c.h.b16 %v636
        %v693 = vunpack.c.l.b16 %v637
        %v694 = vunpack.c.h.b16 %v637
        %v695 = vunpack.c.l.b16 %v638
        %v696 = vunpack.c.h.b16 %v638
        %v697 = vunpack.c.l.b16 %v639
        %v698 = vunpack.c.h.b16 %v639
        %v699 = vunpack.c.l.b16 %v640
        %v700 = vunpack.c.h.b16 %v640
        %v701 = vpack.c.b16 %v671, %v669
        %v702 = vpack.c.b16 %v672, %v670
        %v703 = vpack.c.b16 %v675, %v673
        %v704 = vpack.c.b16 %v676, %v674
        %v705 = vpack.c.b16 %v679, %v677
        %v706 = vpack.c.b16 %v680, %v678
        %v707 = vpack.c.b16 %v683, %v681
        %v708 = vpack.c.b16 %v684, %v682
        %v709 = vpack.c.b16 %v687, %v685
        %v710 = vpack.c.b16 %v688, %v686
        %v711 = vpack.c.b16 %v691, %v689
        %v712 = vpack.c.b16 %v692, %v690
        %v713 = vpack.c.b16 %v695, %v693
        %v714 = vpack.c.b16 %v696, %v694
        %v715 = vpack.c.b16 %v699, %v697
        %v716 = vpack.c.b16 %v700, %v698
        %733 = vmatprep.subr.bf16.mxu0 %v716
        %734 = vmatpush1.bf16.msra.mxu0 %v715
        %735 = vmatprep.subr.bf16.mxu0 %v714
        %736 = vmatpush1.bf16.msra.mxu0 %v713
        %737 = vmatprep.subr.bf16.mxu0 %v712
        %738 = vmatpush1.bf16.msra.mxu0 %v711
        %739 = vmatprep.subr.bf16.mxu0 %v710
        %740 = vmatpush1.bf16.msra.mxu0 %v709
        %741 = vmatprep.subr.bf16.mxu0 %v708
        %742 = vmatpush1.bf16.msra.mxu0 %v707
        %743 = vmatprep.subr.bf16.mxu0 %v706
        %744 = vmatpush1.bf16.msra.mxu0 %v705
        %745 = vmatprep.subr.bf16.mxu0 %v704
        %746 = vmatpush1.bf16.msra.mxu0 %v703
        %747 = vmatprep.subr.bf16.mxu0 %v702
        %748 = vmatpush1.bf16.msra.mxu0 %v701
        %749 = vmatprep.subr.bf16.mxu0 0
        %750 = vmatpush2.bf16.msra.mxu0 0
        %751 = vmatprep.subr.bf16.mxu0 0
        %752 = vmatpush2.bf16.msra.mxu0 0
        %753 = vmatprep.subr.bf16.mxu0 0
        %754 = vmatpush2.bf16.msra.mxu0 0
        %755 = vmatprep.subr.bf16.mxu0 0
        %756 = vmatpush2.bf16.msra.mxu0 0
        %757 = vmatprep.subr.bf16.mxu0 0
        %758 = vmatpush2.bf16.msra.mxu0 0
        %759 = vmatprep.subr.bf16.mxu0 0
        %760 = vmatpush2.bf16.msra.mxu0 0
        %761 = vmatprep.subr.bf16.mxu0 0
        %762 = vmatpush2.bf16.msra.mxu0 0
        %763 = vmatprep.subr.bf16.mxu0 0
        %764 = vmatpush2.bf16.msra.mxu0 0
        %765 = vmatprep.mubr.bf16.mxu0 0
        %766 = vmatmul.mubr.bf16.gmra.mxu0 %v621
        %v767 = vpop.f32.mrf.mxu0
        %v768 = vadd.f32 %v646, %v767
        %v769 = vpop.f32.mrf.mxu0
        %v770 = vadd.f32 %v650, %v769
        %v771 = vpop.f32.mrf.mxu0
        %v772 = vadd.f32 %v646, %v771
        %v773 = vpop.f32.mrf.mxu0
        %v774 = vadd.f32 %v650, %v773
        %775 = vmatprep.mubr.bf16.mxu0 0
        %776 = vmatmul.mubr.bf16.gmra.mxu0 %v622
        %v777 = vpop.f32.mrf.mxu0
        %v778 = vadd.f32 %v646, %v777
        %v779 = vpop.f32.mrf.mxu0
        %v780 = vadd.f32 %v650, %v779
        %v781 = vpop.f32.mrf.mxu0
        %v782 = vadd.f32 %v646, %v781
        %v783 = vpop.f32.mrf.mxu0
        %v784 = vadd.f32 %v650, %v783
        %785 = vmatprep.mubr.bf16.mxu0 0
        %786 = vmatmul.mubr.bf16.gmra.mxu0 %v623
        %v787 = vpop.f32.mrf.mxu0
        %v788 = vadd.f32 %v646, %v787
        %v789 = vpop.f32.mrf.mxu0
        %v790 = vadd.f32 %v650, %v789
        %v791 = vpop.f32.mrf.mxu0
        %v792 = vadd.f32 %v646, %v791
        %v793 = vpop.f32.mrf.mxu0
        %v794 = vadd.f32 %v650, %v793
        %795 = vmatprep.mubr.bf16.mxu0 0
        %796 = vmatmul.mubr.bf16.gmra.mxu0 %v624
        %v797 = vpop.f32.mrf.mxu0
        %v798 = vadd.f32 %v646, %v797
        %v799 = vpop.f32.mrf.mxu0
        %v800 = vadd.f32 %v650, %v799
        %v801 = vpop.f32.mrf.mxu0
        %v802 = vadd.f32 %v646, %v801
        %v803 = vpop.f32.mrf.mxu0
        %v804 = vadd.f32 %v650, %v803
        %805 = vdwg.mxu0
        %v806 = vrot.slane %v768, 4
        %v807 = vmax.f32 %v768, %v806
        %v808 = vrot.slane %v807, 2
        %v809 = vmax.f32 %v807, %v808
        %v810 = vrot.slane %v809, 1
        %v811 = vmax.f32 %v809, %v810
        %v812 = vrot.slane %v770, 4
        %v813 = vmax.f32 %v770, %v812
        %v814 = vrot.slane %v813, 2
        %v815 = vmax.f32 %v813, %v814
        %v816 = vrot.slane %v815, 1
        %v817 = vmax.f32 %v815, %v816
        %v818 = vrot.slane %v772, 4
        %v819 = vmax.f32 %v772, %v818
        %v820 = vrot.slane %v819, 2
        %v821 = vmax.f32 %v819, %v820
        %v822 = vrot.slane %v821, 1
        %v823 = vmax.f32 %v821, %v822
        %v824 = vrot.slane %v774, 4
        %v825 = vmax.f32 %v774, %v824
        %v826 = vrot.slane %v825, 2
        %v827 = vmax.f32 %v825, %v826
        %v828 = vrot.slane %v827, 1
        %v829 = vmax.f32 %v827, %v828
        %v830 = vrot.slane %v778, 4
        %v831 = vmax.f32 %v778, %v830
        %v832 = vrot.slane %v831, 2
        %v833 = vmax.f32 %v831, %v832
        %v834 = vrot.slane %v833, 1
        %v835 = vmax.f32 %v833, %v834
        %v836 = vrot.slane %v780, 4
        %v837 = vmax.f32 %v780, %v836
        %v838 = vrot.slane %v837, 2
        %v839 = vmax.f32 %v837, %v838
        %v840 = vrot.slane %v839, 1
        %v841 = vmax.f32 %v839, %v840
        %v842 = vrot.slane %v782, 4
        %v843 = vmax.f32 %v782, %v842
        %v844 = vrot.slane %v843, 2
        %v845 = vmax.f32 %v843, %v844
        %v846 = vrot.slane %v845, 1
        %v847 = vmax.f32 %v845, %v846
        %v848 = vrot.slane %v784, 4
        %v849 = vmax.f32 %v784, %v848
        %v850 = vrot.slane %v849, 2
        %v851 = vmax.f32 %v849, %v850
        %v852 = vrot.slane %v851, 1
        %v853 = vmax.f32 %v851, %v852
        %v854 = vrot.slane %v788, 4
        %v855 = vmax.f32 %v788, %v854
        %v856 = vrot.slane %v855, 2
        %v857 = vmax.f32 %v855, %v856
        %v858 = vrot.slane %v857, 1
        %v859 = vmax.f32 %v857, %v858
        %v860 = vrot.slane %v790, 4
        %v861 = vmax.f32 %v790, %v860
        %v862 = vrot.slane %v861, 2
        %v863 = vmax.f32 %v861, %v862
        %v864 = vrot.slane %v863, 1
        %v865 = vmax.f32 %v863, %v864
        %v866 = vrot.slane %v792, 4
        %v867 = vmax.f32 %v792, %v866
        %v868 = vrot.slane %v867, 2
        %v869 = vmax.f32 %v867, %v868
        %v870 = vrot.slane %v869, 1
        %v871 = vmax.f32 %v869, %v870
        %v872 = vrot.slane %v794, 4
        %v873 = vmax.f32 %v794, %v872
        %v874 = vrot.slane %v873, 2
        %v875 = vmax.f32 %v873, %v874
        %v876 = vrot.slane %v875, 1
        %v877 = vmax.f32 %v875, %v876
        %v878 = vrot.slane %v798, 4
        %v879 = vmax.f32 %v798, %v878
        %v880 = vrot.slane %v879, 2
        %v881 = vmax.f32 %v879, %v880
        %v882 = vrot.slane %v881, 1
        %v883 = vmax.f32 %v881, %v882
        %v884 = vrot.slane %v800, 4
        %v885 = vmax.f32 %v800, %v884
        %v886 = vrot.slane %v885, 2
        %v887 = vmax.f32 %v885, %v886
        %v888 = vrot.slane %v887, 1
        %v889 = vmax.f32 %v887, %v888
        %v890 = vrot.slane %v802, 4
        %v891 = vmax.f32 %v802, %v890
        %v892 = vrot.slane %v891, 2
        %v893 = vmax.f32 %v891, %v892
        %v894 = vrot.slane %v893, 1
        %v895 = vmax.f32 %v893, %v894
        %v896 = vrot.slane %v804, 4
        %v897 = vmax.f32 %v804, %v896
        %v898 = vrot.slane %v897, 2
        %v899 = vmax.f32 %v897, %v898
        %v900 = vrot.slane %v899, 1
        %v901 = vmax.f32 %v899, %v900
        %p902 = scmp.eq.s32.totalorder %s32, 0
        // Predicated region
        $region53: #{tpu_custom_call.1} parent=39 // pred_check
          %p903 = pneg %p902
        $region54: #{tpu_custom_call.1} parent=39 // pred_check_branch
          %905 = sbr.rel (%p903) target = $region56
        $region55: #{tpu_custom_call.1} parent=39 // pred_region
          %vm922 = vcmask 1041409
          %v923 = vsel %vm922, %v823, %v811
          %vm924 = vcmask 1042434
          %v925 = vsel %vm924, %v835, %v923
          %vm926 = vcmask 1043459
          %v927 = vsel %vm926, %v847, %v925
          %vm928 = vcmask 1044484
          %v929 = vsel %vm928, %v859, %v927
          %vm930 = vcmask 1045509
          %v931 = vsel %vm930, %v871, %v929
          %vm932 = vcmask 1046534
          %v933 = vsel %vm932, %v883, %v931
          %vm934 = vcmask 1047559
          %v935 = vsel %vm934, %v895, %v933
          %v936 = vsel %vm922, %v829, %v817
          %v937 = vsel %vm924, %v841, %v936
          %v938 = vsel %vm926, %v853, %v937
          %v939 = vsel %vm928, %v865, %v938
          %v940 = vsel %vm930, %v877, %v939
          %v941 = vsel %vm932, %v889, %v940
          %v942 = vsel %vm934, %v901, %v941
          %945 = vst [vmem:[#allocation2] sm:$0xff] %v935
          %946 = vst [vmem:[#allocation2 + $0x8] sm:$0xff] %v942
        $region56: #{tpu_custom_call.1} parent=39 // pred_fallthru
          _
        %p947 = scmp.ne.s32.totalorder %s32, 0
        // Predicated region
        $region57: #{tpu_custom_call.1} parent=39 // pred_check
          %p948 = pneg %p947
        $region58: #{tpu_custom_call.1} parent=39 // pred_check_branch
          %950 = sbr.rel (%p948) target = $region60
        $region59: #{tpu_custom_call.1} parent=39 // pred_region
          %v951 = vld [vmem:[#allocation2] sm:$0xff]
          %v952 = vld [vmem:[#allocation2 + $0x8] sm:$0xff]
          %vm969 = vcmask 1041409
          %v970 = vsel %vm969, %v823, %v811
          %vm971 = vcmask 1042434
          %v972 = vsel %vm971, %v835, %v970
          %vm973 = vcmask 1043459
          %v974 = vsel %vm973, %v847, %v972
          %vm975 = vcmask 1044484
          %v976 = vsel %vm975, %v859, %v974
          %vm977 = vcmask 1045509
          %v978 = vsel %vm977, %v871, %v976
          %vm979 = vcmask 1046534
          %v980 = vsel %vm979, %v883, %v978
          %vm981 = vcmask 1047559
          %v982 = vsel %vm981, %v895, %v980
          %v983 = vsel %vm969, %v829, %v817
          %v984 = vsel %vm971, %v841, %v983
          %v985 = vsel %vm973, %v853, %v984
          %v986 = vsel %vm975, %v865, %v985
          %v987 = vsel %vm977, %v877, %v986
          %v988 = vsel %vm979, %v889, %v987
          %v989 = vsel %vm981, %v901, %v988
          %v992 = vmax.f32 %v951, %v982
          %v993 = vmax.f32 %v952, %v989
          %994 = vst [vmem:[#allocation2] sm:$0xff] %v992
          %995 = vst [vmem:[#allocation2 + $0x8] sm:$0xff] %v993
        $region60: #{tpu_custom_call.1} parent=39 // pred_fallthru
          _
        // Predicated region
        $region61: #{tpu_custom_call.1} parent=39 // pred_check
          %p996 = pneg %p902
        $region62: #{tpu_custom_call.1} parent=39 // pred_check_branch
          %998 = sbr.rel (%p996) target = $region64
        $region63: #{tpu_custom_call.1} parent=39 // pred_region
          %v999 = vld [vmem:[#allocation2] sm:$0xff]
          %v1000 = vld [vmem:[#allocation2 + $0x8] sm:$0xff]
          %1001 = vst [vmem:[%s371] sm:$0xff] %v999
          %1002 = vst [vmem:[%s371 + $0x8] sm:$0xff] %v1000
        $region64: #{tpu_custom_call.1} parent=39 // pred_fallthru
          _
        %s1003 = sand.u32 %s188, 1
        %s1004 = scalar_lea.sflag [#allocation5], %s1003
        %s1005 = sand.u32 %s188, 1
        %s1006 = smul.addr %s1005, 16
        %s1007 = scalar_lea.vmem [#allocation9], %s1006
        // Predicated region
        $region65: #{tpu_custom_call.1} parent=39 // pred_check
          %p1008 = pneg %p198
        $region66: #{tpu_custom_call.1} parent=39 // pred_check_branch
          %1010 = sbr.rel (%p1008) target = $region68
        $region67: #{tpu_custom_call.1} parent=39 // pred_region
          %s1012 = ssub.s32 256, 256
          %1013 = vsyncadd %s1004, %s1012
          %s1014 = smul.addr %s30, 2
          %s1015 = smul.addr %s31, 2
          %s1016 = sadd.s32 %s1014, %s1015
          %s1017 = smul.addr %s1016, 128
          %s1018 = scalar_lea.hbm %s5, %s1017
          %s1020 = sshll.u32 %s1007, 4
          %s1021 = int_to_ptr.vmem [resolvable:$true] %s1020
          %1023 = dma.vmem_to_hbm [thread:$0]  %s1021, 256, %s1018, %s1004
        $region68: #{tpu_custom_call.1} parent=39 // pred_fallthru
          _
      $region40: #{tpu_custom_call.1} parent=5 // pred_fallthru
        _
      %p1024 = scmp.le.s32.totalorder 2, %s20
      // Predicated region
      $region69: #{tpu_custom_call.1} parent=5 // pred_check
        %p1025 = pneg %p1024
      $region70: #{tpu_custom_call.1} parent=5 // pred_check_branch
        %1027 = sbr.rel (%p1025) target = $region72
      $region71: #{tpu_custom_call.1} parent=5 // pred_region
        %s1028 = ssub.s32 %s20, 2
        // Predicated region
        $region73: #{tpu_custom_call.1} parent=71 // pred_check
          %p1029 = pneg %p204
        $region74: #{tpu_custom_call.1} parent=71 // pred_check_branch
          %1031 = sbr.rel (%p1029) target = $region76
        $region75: #{tpu_custom_call.1} parent=71 // pred_region
          %s1032 = sand.u32 %s189, 1
          %s1033 = scalar_lea.sflag [#allocation5], %s1032
          %s1034 = sand.u32 %s189, 1
          %s1035 = smul.addr %s1034, 16
          %s1036 = scalar_lea.vmem [#allocation9], %s1035
          %1037 = dma.done %s1033, 256
        $region76: #{tpu_custom_call.1} parent=71 // pred_fallthru
          _
      $region72: #{tpu_custom_call.1} parent=5 // pred_fallthru
        _
    $region6: #{tpu_custom_call.1} parent=1 // loop_footer
      %s24 = sadd.s32 1, %s20
    $region7: #{tpu_custom_call.1} parent=1 // loop_footer_branch
      %19 = sbr.rel target = $region3
    $region8: #{tpu_custom_call.1} parent=1 // loop_exit
      _
    %1038 = vsyncpa [#allocation4], 1
    %s1039 = scalar_lea.sflag [#allocation4], 1
    %1040 = vsyncpa %s1039, 1
    %1041 = vsyncpa [#allocation7], 1
    %s1042 = scalar_lea.sflag [#allocation7], 1
    %1043 = vsyncpa %s1042, 1
    %1044 = vsyncpa [#allocation5], 1
    %s1045 = scalar_lea.sflag [#allocation5], 1
    %1046 = vsyncpa %s1045, 1

</llo_original>
